<compile_context>
chip_gen: v6e
topology: v6e:2x2x1
jax: 0.10.0
libtpu: 0.0.40
codegen_flags: <defaults>
</compile_context>

<pallas_src>
import math

import jax
import jax.numpy as jnp
from jax import lax
from jax.experimental import pallas as pl
from jax.experimental.pallas import tpu as pltpu

_INV_SQRT2 = 1.0 / math.sqrt(2.0)
_SQRT_2_OVER_PI = math.sqrt(2.0 / math.pi)


def _round_up(x, m):
    return (x + m - 1) // m * m


def _cdiv(a, b):
    return (a + b - 1) // b


def _sublane_pack(dtype):
    # rows per packed sublane group: f32 -> 8, bf16 -> 16, int8/fp8 -> 32
    return max(8, 32 // jnp.dtype(dtype).itemsize)


# ---------------------------------------------------------------------------
# Kernel
# ---------------------------------------------------------------------------
def _make_kernel(accumulate_into_output, approximate_gelu):
    def _gelu(h):
        if approximate_gelu:
            # tanh approximation: moves work to the (otherwise idle) EUP slot.
            return 0.5 * h * (1.0 + jnp.tanh(
                _SQRT_2_OVER_PI * (h + 0.044715 * h * h * h)))
        # exact erf GELU (torch.nn.functional.gelu default parity)
        return 0.5 * h * (1.0 + lax.erf(h * _INV_SQRT2))

    def _body(x_ref, w1_ref, b1_ref, w2_ref, b2_ref, o_ref, acc_ref):
        k = pl.program_id(1)

        @pl.when(k == 0)
        def _():
            # fold fc2 bias into the accumulator init (saves a final add pass)
            acc_ref[...] = jnp.broadcast_to(
                b2_ref[...].astype(jnp.float32), acc_ref.shape)

        # fc1 partial: (tm, Dp) @ (Dp, ti) on the MXU, native dtype, f32 acc
        h = jnp.dot(x_ref[...], w1_ref[...], preferred_element_type=jnp.float32)
        h = h + b1_ref[...].astype(jnp.float32)
        # elementwise -> applying per I-tile is exact
        h = _gelu(h)

        # fc2 partial: (tm, ti) @ (ti, Dp) accumulated over the I axis
        acc_ref[...] += jnp.dot(h.astype(w2_ref.dtype), w2_ref[...],
                                preferred_element_type=jnp.float32)

        if not accumulate_into_output:
            @pl.when(k == pl.num_programs(1) - 1)
            def _():
                o_ref[...] = acc_ref[...].astype(o_ref.dtype)

    if accumulate_into_output:
        # f32 output: accumulate straight into the resident output block
        def kernel(x_ref, w1_ref, b1_ref, w2_ref, b2_ref, o_ref):
            _body(x_ref, w1_ref, b1_ref, w2_ref, b2_ref, o_ref, o_ref)
    else:
        def kernel(x_ref, w1_ref, b1_ref, w2_ref, b2_ref, o_ref, acc_ref):
            _body(x_ref, w1_ref, b1_ref, w2_ref, b2_ref, o_ref, acc_ref)
    return kernel


# ---------------------------------------------------------------------------
# Load-time parameter preparation (hoisted out of the per-call path)
# ---------------------------------------------------------------------------
def prepare_clip_mlp_params(w1, b1, w2, b2, compute_dtype=None):
    """One-time weight prep: transpose + pad to lane-dense slabs.

    w1: [I, D], b1: [I], w2: [D, I], b2: [D]  (PyTorch nn.Linear layout).
    Optionally cast weights to compute_dtype (e.g. jnp.bfloat16); biases stay
    f32 because they are applied inside the f32 accumulation path.
    """
    I, D = w1.shape
    Dp = _round_up(D, 128)
    Ip = _round_up(I, 128)
    w_dtype = w1.dtype if compute_dtype is None else compute_dtype

    w1t = jnp.pad(w1.T.astype(w_dtype), ((0, Dp - D), (0, Ip - I)))   # (Dp, Ip)
    w2t = jnp.pad(w2.T.astype(w_dtype), ((0, Ip - I), (0, Dp - D)))   # (Ip, Dp)
    b1r = jnp.pad(b1.astype(jnp.float32), (0, Ip - I)).reshape(1, Ip)
    b2r = jnp.pad(b2.astype(jnp.float32), (0, Dp - D)).reshape(1, Dp)
    return dict(w1t=w1t, b1r=b1r, w2t=w2t, b2r=b2r,
                D=D, I=I, Dp=Dp, Ip=Ip, compute_dtype=compute_dtype)


# ---------------------------------------------------------------------------
# Tile / VMEM-budget selection
# ---------------------------------------------------------------------------
def _vmem_budget_bytes():
    try:
        cap = int(pltpu.get_tpu_info().vmem_capacity_bytes)
    except Exception:
        cap = 64 << 20  # conservative fallback: v7x per-TensorCore VMEM
    # ~72% of physical: 128 MiB (v5e/v6e) -> ~92 MiB, 64 MiB (v7x) -> ~46 MiB
    return min(96 << 20, int(cap * 0.72))


def _footprint_bytes(tm, ti, Dp, in_b, w_b, out_b, use_acc):
    x_b = 2 * tm * Dp * in_b            # double-buffered x tile
    o_b = 2 * tm * Dp * out_b           # double-buffered output tile
    acc_b = tm * Dp * 4 if use_acc else 0
    w_bts = 4 * Dp * ti * w_b           # double-buffered fc1 + fc2 slabs
    h_b = 2 * tm * ti * 4               # GELU / matmul intermediates headroom
    bias_b = 4 * (ti + Dp) * 4
    return x_b + o_b + acc_b + w_bts + h_b + bias_b


def _choose_tiles(M, Dp, Ip, in_dtype, w_dtype, out_dtype, use_acc, budget,
                  tm_target, ti_target):
    pack = _sublane_pack(in_dtype)
    in_b = jnp.dtype(in_dtype).itemsize
    w_b = jnp.dtype(w_dtype).itemsize
    out_b = jnp.dtype(out_dtype).itemsize

    # Row tile: up to tm_target, rounded to the sublane packing; keep >= 2 row
    # tiles when there is enough work so the "parallel" axis can shard across
    # v7x's two TensorCores.
    m_rounded = _round_up(M, pack)
    tm = min(tm_target, m_rounded)
    while tm > 128 and _cdiv(m_rounded, tm) < 2:
        tm = max(128, tm // 2)
    tm = _round_up(tm, pack)

    # I tile: largest multiple of 128 <= target that divides Ip.
    def _pick_ti(target):
        ti = max(128, min(target, Ip))
        while Ip % ti:
            ti -= 128
        return ti

    ti = _pick_ti(ti_target)
    # Shrink until the double-buffered footprint fits the VMEM budget.
    while _footprint_bytes(tm, ti, Dp, in_b, w_b, out_b, use_acc) > budget:
        if ti > 256:
            ti = _pick_ti(ti // 2)
        elif tm > 128:
            tm = _round_up(max(128, tm // 2), pack)
        elif ti > 128:
            ti = _pick_ti(128)
        else:
            break
    return tm, ti


# ---------------------------------------------------------------------------
# Forward pass
# ---------------------------------------------------------------------------
def clip_mlp_apply(x, params, *, tm=512, ti=1024, approximate_gelu=False,
                   interpret=False):
    """gelu(x @ w1.T + b1) @ w2.T + b2 with pre-prepared (padded) params."""
    orig_shape = x.shape
    D, Dp, Ip = params["D"], params["Dp"], params["Ip"]
    assert orig_shape[-1] == D
    out_dtype = x.dtype
    if params["compute_dtype"] is not None:
        x = x.astype(params["compute_dtype"])

    x2d = x.reshape(-1, D)
    M = x2d.shape[0]

    budget = _vmem_budget_bytes()
    accumulate_into_output = jnp.dtype(out_dtype) == jnp.dtype(jnp.float32)
    tm, ti = _choose_tiles(M, Dp, Ip, x2d.dtype, params["w1t"].dtype, out_dtype,
                           not accumulate_into_output, budget,
                           tm_target=tm, ti_target=ti)
    Mp = _round_up(M, tm)

    # Pad activations only when needed (no-op for CLIP D=768/1024, M % tm == 0).
    if (Mp, Dp) != (M, D):
        x_p = jnp.pad(x2d, ((0, Mp - M), (0, Dp - D)))
    else:
        x_p = x2d

    kernel = _make_kernel(accumulate_into_output, approximate_gelu)
    scratch = ([] if accumulate_into_output
               else [pltpu.VMEM((tm, Dp), jnp.float32)])

    out = pl.pallas_call(
        kernel,
        out_shape=jax.ShapeDtypeStruct((Mp, Dp), out_dtype),
        grid_spec=pltpu.PrefetchScalarGridSpec(
            num_scalar_prefetch=0,
            grid=(Mp // tm, Ip // ti),
            in_specs=[
                pl.BlockSpec((tm, Dp), lambda i, k: (i, 0)),   # x tile (resident over k)
                pl.BlockSpec((Dp, ti), lambda i, k: (0, k)),   # fc1 weight.T slab
                pl.BlockSpec((1, ti), lambda i, k: (0, k)),    # fc1 bias slab
                pl.BlockSpec((ti, Dp), lambda i, k: (k, 0)),   # fc2 weight.T slab
                pl.BlockSpec((1, Dp), lambda i, k: (0, 0)),    # fc2 bias
            ],
            out_specs=pl.BlockSpec((tm, Dp), lambda i, k: (i, 0)),
            scratch_shapes=scratch,
        ),
        compiler_params=pltpu.CompilerParams(
            dimension_semantics=("parallel", "arbitrary"),
            vmem_limit_bytes=budget),
        interpret=interpret,
    )(x_p, params["w1t"], params["b1r"], params["w2t"], params["b2r"])

    if (Mp, Dp) != (M, D):
        out = out[:M, :D]
    return out.reshape(orig_shape)


def clip_mlp(x, w1, b1, w2, b2, **kwargs):
    """Convenience one-shot path (prepares weights per call).

    For repeated calls, hoist prepare_clip_mlp_params() to parameter-load time
    and call clip_mlp_apply() — that removes a full HBM round trip of the
    weights from every invocation.
    """
    return clip_mlp_apply(x, prepare_clip_mlp_params(w1, b1, w2, b2), **kwargs)


# ---------------------------------------------------------------------------
# Demo / self-test
# ---------------------------------------------------------------------------
def _init_params(key, embed_dim, intermediate_size, dtype=jnp.float32):
    # Deterministic synthetic parameters (Kaiming-uniform-ish like nn.Linear)
    k1, k2, k3, k4 = jax.random.split(key, 4)
    bound1 = 1.0 / math.sqrt(embed_dim)
    bound2 = 1.0 / math.sqrt(intermediate_size)
    w1 = jax.random.uniform(k1, (intermediate_size, embed_dim), dtype,
                            minval=-bound1, maxval=bound1)
    b1 = jax.random.uniform(k2, (intermediate_size,), dtype,
                            minval=-bound1, maxval=bound1)
    w2 = jax.random.uniform(k3, (embed_dim, intermediate_size), dtype,
                            minval=-bound2, maxval=bound2)
    b2 = jax.random.uniform(k4, (embed_dim,), dtype,
                            minval=-bound2, maxval=bound2)
    return w1, b1, w2, b2


if __name__ == "__main__":
    B, S = 2, 8                 # batch, sequence
    embed_dim = 32
    intermediate_size = 128

    key = jax.random.PRNGKey(0)
    kx, kp = jax.random.split(key)
    x = jax.random.normal(kx, (B, S, embed_dim), jnp.float32)
    w1, b1, w2, b2 = _init_params(kp, embed_dim, intermediate_size)

    # Load-time weight prep, reused across calls (hoisted out of the hot path).
    params = prepare_clip_mlp_params(w1, b1, w2, b2)
    y = clip_mlp_apply(x, params)
    y = jax.block_until_ready(y)

    # pure-JAX reference (erf GELU == torch F.gelu default)
    h_ref = x @ w1.T + b1
    h_ref = 0.5 * h_ref * (1.0 + lax.erf(h_ref / math.sqrt(2.0)))
    y_ref = h_ref @ w2.T + b2
    assert y.shape == (B, S, embed_dim)
    assert jnp.allclose(y, y_ref, atol=1e-5, rtol=1e-5)

    print("KERNEL_OK")
</pallas_src>

<mosaic_0001>
module attributes {stable_mosaic.version = 11 : i64} {
  func.func @kernel(%arg0: i32, %arg1: i32, %arg2: memref<16x128xf32, #tpu.memory_space<vmem>>, %arg3: memref<128x128xf32, #tpu.memory_space<vmem>>, %arg4: memref<1x128xf32, #tpu.memory_space<vmem>>, %arg5: memref<128x128xf32, #tpu.memory_space<vmem>>, %arg6: memref<1x128xf32, #tpu.memory_space<vmem>>, %arg7: memref<16x128xf32, #tpu.memory_space<vmem>>) attributes {dimension_semantics = [#tpu.dimension_semantics<parallel>, #tpu.dimension_semantics<arbitrary>], iteration_bounds = array<i64: 1, 1>, scalar_prefetch = 0 : i64, scratch_operands = 0 : i64, tpu.core_type = #tpu.core_type<tc>, window_params = [{transform_indices = @transform_0, window_bounds = array<i64: 16, 128>}, {transform_indices = @transform_1, window_bounds = array<i64: 128, 128>}, {transform_indices = @transform_2, window_bounds = array<i64: 1, 128>}, {transform_indices = @transform_3, window_bounds = array<i64: 128, 128>}, {pipeline_mode = #tpu.pipeline_mode<synchronous>, transform_indices = @transform_4, window_bounds = array<i64: 1, 128>}, {transform_indices = @transform_5, window_bounds = array<i64: 16, 128>}]} {
    %c0_i32 = arith.constant 0 : i32
    %0 = arith.cmpi eq, %arg1, %c0_i32 : i32
    %1 = arith.extui %0 : i1 to i32
    %c0_i32_0 = arith.constant 0 : i32
    %2 = arith.cmpi ne, %1, %c0_i32_0 : i32
    scf.if %2 {
      %c0_16 = arith.constant 0 : index
      %c0_17 = arith.constant 0 : index
      %22 = vector.load %arg6[%c0_16, %c0_17] : memref<1x128xf32, #tpu.memory_space<vmem>>, vector<1x128xf32>
      %23 = vector.shape_cast %22 : vector<1x128xf32> to vector<1x128xf32>
      %24 = vector.broadcast %23 : vector<1x128xf32> to vector<16x128xf32>
      %c0_18 = arith.constant 0 : index
      %c0_19 = arith.constant 0 : index
      %25 = vector.load %arg7[%c0_18, %c0_19] : memref<16x128xf32, #tpu.memory_space<vmem>>, vector<16x128xf32>
      tpu.vector_store %arg7[%c0_18, %c0_19], %24 {strides = array<i32>} : memref<16x128xf32, #tpu.memory_space<vmem>>, vector<16x128xf32>,
    } else {
    }
    %c0 = arith.constant 0 : index
    %c0_1 = arith.constant 0 : index
    %3 = vector.load %arg2[%c0, %c0_1] : memref<16x128xf32, #tpu.memory_space<vmem>>, vector<16x128xf32>
    %c0_2 = arith.constant 0 : index
    %c0_3 = arith.constant 0 : index
    %4 = vector.load %arg3[%c0_2, %c0_3] : memref<128x128xf32, #tpu.memory_space<vmem>>, vector<128x128xf32>
    %cst = arith.constant dense<0.000000e+00> : vector<16x128xf32>
    %5 = tpu.matmul %3, %4, %cst {dimension_numbers = #tpu.dot_dimension_numbers<[1], [0], [0], [1], [0, 0, 1, 1], [], []>} : vector<16x128xf32>, vector<128x128xf32>, vector<16x128xf32> -> vector<16x128xf32>
    %c0_4 = arith.constant 0 : index
    %c0_5 = arith.constant 0 : index
    %6 = vector.load %arg4[%c0_4, %c0_5] : memref<1x128xf32, #tpu.memory_space<vmem>>, vector<1x128xf32>
    %7 = vector.broadcast %6 : vector<1x128xf32> to vector<16x128xf32>
    %8 = arith.addf %5, %7 : vector<16x128xf32>
    %cst_6 = arith.constant 5.000000e-01 : f32
    %9 = vector.broadcast %cst_6 : f32 to vector<16x128xf32>
    %10 = arith.mulf %9, %8 : vector<16x128xf32>
    %cst_7 = arith.constant 0.707106769 : f32
    %11 = vector.broadcast %cst_7 : f32 to vector<16x128xf32>
    %12 = arith.mulf %8, %11 : vector<16x128xf32>
    %13 = math.erf %12 : vector<16x128xf32>
    %cst_8 = arith.constant 1.000000e+00 : f32
    %14 = vector.broadcast %cst_8 : f32 to vector<16x128xf32>
    %15 = arith.addf %14, %13 : vector<16x128xf32>
    %16 = arith.mulf %10, %15 : vector<16x128xf32>
    %c0_9 = arith.constant 0 : index
    %c0_10 = arith.constant 0 : index
    %17 = vector.load %arg7[%c0_9, %c0_10] : memref<16x128xf32, #tpu.memory_space<vmem>>, vector<16x128xf32>
    %c0_11 = arith.constant 0 : index
    %c0_12 = arith.constant 0 : index
    %18 = vector.load %arg5[%c0_11, %c0_12] : memref<128x128xf32, #tpu.memory_space<vmem>>, vector<128x128xf32>
    %cst_13 = arith.constant dense<0.000000e+00> : vector<16x128xf32>
    %19 = tpu.matmul %16, %18, %cst_13 {dimension_numbers = #tpu.dot_dimension_numbers<[1], [0], [0], [1], [0, 0, 1, 1], [], []>} : vector<16x128xf32>, vector<128x128xf32>, vector<16x128xf32> -> vector<16x128xf32>
    %20 = arith.addf %17, %19 : vector<16x128xf32>
    %c0_14 = arith.constant 0 : index
    %c0_15 = arith.constant 0 : index
    %21 = vector.load %arg7[%c0_14, %c0_15] : memref<16x128xf32, #tpu.memory_space<vmem>>, vector<16x128xf32>
    tpu.vector_store %arg7[%c0_14, %c0_15], %20 {strides = array<i32>} : memref<16x128xf32, #tpu.memory_space<vmem>>, vector<16x128xf32>,
    return
  }
  func.func @transform_0(%arg0: i32, %arg1: i32) -> (i32, i32) {
    %c0_i32 = arith.constant 0 : i32
    %c0_i32_0 = arith.constant 0 : i32
    return %arg0, %c0_i32 : i32, i32
  }
  func.func @transform_1(%arg0: i32, %arg1: i32) -> (i32, i32) {
    %c0_i32 = arith.constant 0 : i32
    %c0_i32_0 = arith.constant 0 : i32
    return %c0_i32, %arg1 : i32, i32
  }
  func.func @transform_2(%arg0: i32, %arg1: i32) -> (i32, i32) {
    %c0_i32 = arith.constant 0 : i32
    %c0_i32_0 = arith.constant 0 : i32
    return %c0_i32, %arg1 : i32, i32
  }
  func.func @transform_3(%arg0: i32, %arg1: i32) -> (i32, i32) {
    %c0_i32 = arith.constant 0 : i32
    %c0_i32_0 = arith.constant 0 : i32
    return %arg1, %c0_i32 : i32, i32
  }
  func.func @transform_4(%arg0: i32, %arg1: i32) -> (i32, i32) {
    %c0_i32 = arith.constant 0 : i32
    %c0_i32_0 = arith.constant 0 : i32
    %c0_i32_1 = arith.constant 0 : i32
    return %c0_i32, %c0_i32_0 : i32, i32
  }
  func.func @transform_5(%arg0: i32, %arg1: i32) -> (i32, i32) {
    %c0_i32 = arith.constant 0 : i32
    %c0_i32_0 = arith.constant 0 : i32
    return %arg0, %c0_i32 : i32, i32
  }
}

</mosaic_0001>

<llo_original>
// kernel: tpu_custom_call.1
$region0: #{tpu_custom_call.1}
  #allocation0 [shape = 'u32[]', space=smem, size = 0x4, offset = 0x4, fixed_abs, tag = 'smem constant byte address 0x4 - core index']
  #allocation1 [shape = 'u32[144,128]{1,0:T(1,128)}', space=vmem, size = 0x12000, scoped, tag = 'internal scratch']
  %s0 = inlined_call_operand.hbm [shape: f32[16,128], index: 0, kind: input, shape index: {}]
  %s1 = inlined_call_operand.hbm [shape: f32[128,128], index: 1, kind: input, shape index: {}]
  %s2 = inlined_call_operand.vmem [shape: f32[1,128], index: 2, kind: input, shape index: {}]
  %s3 = inlined_call_operand.hbm [shape: f32[128,128], index: 3, kind: input, shape index: {}]
  %s4 = inlined_call_operand.vmem [shape: f32[1,128], index: 4, kind: input, shape index: {}]
  %s5 = inlined_call_operand.hbm [shape: f32[16,128], index: 5, kind: output, shape index: {}]
  %s6 = sld [smem:[#allocation0]]
  $region46: #{tpu_custom_call.1} parent=0
    _
  %s8 = ssub.s32 1, %s6
  %s9 = scalar_select 0, %s8, %s6
  $region1: #{tpu_custom_call.1} parent=0
    #allocation2 [shape = 'u8[8192]{0}', space=vmem, size = 0x2000, scoped, tag = 'input window, operand 0, single buffered']
    #allocation3 [shape = 's32[1]{0}', space=sflag, size = 0x4, scoped, tag = 'scoped memory for tpu_custom_call.1']
    #allocation4 [shape = 's32[1]{0}', space=sflag, size = 0x4, scoped, tag = 'scoped memory for tpu_custom_call.1']
    #allocation5 [shape = 'u8[65536]{0}', space=vmem, size = 0x10000, scoped, tag = 'input window, operand 1, single buffered']
    #allocation6 [shape = 's32[1]{0}', space=sflag, size = 0x4, scoped, tag = 'scoped memory for tpu_custom_call.1']
    #allocation7 [shape = 'u8[65536]{0}', space=vmem, size = 0x10000, scoped, tag = 'input window, operand 3, single buffered']
    #allocation8 [shape = 'u8[8192]{0}', space=vmem, size = 0x2000, scoped, tag = 'output window, operand 0, single buffered']
    %10 = vsyncpa [#allocation3], 0
    %11 = vsyncpa [#allocation6], 0
    %12 = vsyncpa [#allocation4], 0
    // Predicated region
    $region2: #{tpu_custom_call.1} parent=1 // pred_check
      _
    $region3: #{tpu_custom_call.1} parent=1 // pred_check_branch
      %14 = sbr.rel (0) target = $region5
    $region4: #{tpu_custom_call.1} parent=1 // pred_region
      %s16 = ssub.s32 256, 256
      %17 = vsyncadd [#allocation3], %s16
      %s18 = sshll.u32 [#allocation2], 4
      %s19 = int_to_ptr.vmem [resolvable:$true] %s18
      %24 = dma.hbm_to_vmem [thread:$0]  %s0, 256, %s19, [#allocation3], 128, 128, 8
    $region5: #{tpu_custom_call.1} parent=1 // pred_fallthru
      _
    // Predicated region
    $region6: #{tpu_custom_call.1} parent=1 // pred_check
      _
    $region7: #{tpu_custom_call.1} parent=1 // pred_check_branch
      %26 = sbr.rel (0) target = $region9
    $region8: #{tpu_custom_call.1} parent=1 // pred_region
      %s28 = ssub.s32 2048, 2048
      %29 = vsyncadd [#allocation6], %s28
      %s30 = sshll.u32 [#allocation5], 4
      %s31 = int_to_ptr.vmem [resolvable:$true] %s30
      %36 = dma.hbm_to_vmem [thread:$0]  %s1, 2048, %s31, [#allocation6], 128, 128, 8
    $region9: #{tpu_custom_call.1} parent=1 // pred_fallthru
      _
    // Predicated region
    $region10: #{tpu_custom_call.1} parent=1 // pred_check
      _
    $region11: #{tpu_custom_call.1} parent=1 // pred_check_branch
      %38 = sbr.rel (0) target = $region13
    $region12: #{tpu_custom_call.1} parent=1 // pred_region
      _
    $region13: #{tpu_custom_call.1} parent=1 // pred_fallthru
      _
    // Predicated region
    $region14: #{tpu_custom_call.1} parent=1 // pred_check
      _
    $region15: #{tpu_custom_call.1} parent=1 // pred_check_branch
      %40 = sbr.rel (0) target = $region17
    $region16: #{tpu_custom_call.1} parent=1 // pred_region
      %s42 = ssub.s32 2048, 2048
      %43 = vsyncadd [#allocation6], %s42
      %s44 = sshll.u32 [#allocation7], 4
      %s45 = int_to_ptr.vmem [resolvable:$true] %s44
      %50 = dma.hbm_to_vmem [thread:$0]  %s3, 2048, %s45, [#allocation6], 128, 128, 8
    $region17: #{tpu_custom_call.1} parent=1 // pred_fallthru
      _
    // Predicated region
    $region18: #{tpu_custom_call.1} parent=1 // pred_check
      _
    $region19: #{tpu_custom_call.1} parent=1 // pred_check_branch
      %52 = sbr.rel (0) target = $region21
    $region20: #{tpu_custom_call.1} parent=1 // pred_region
      _
    $region21: #{tpu_custom_call.1} parent=1 // pred_fallthru
      _
    // Predicated region
    $region22: #{tpu_custom_call.1} parent=1 // pred_check
      _
    $region23: #{tpu_custom_call.1} parent=1 // pred_check_branch
      %54 = sbr.rel (0) target = $region25
    $region24: #{tpu_custom_call.1} parent=1 // pred_region
      %55 = dma.done [#allocation3], 256
    $region25: #{tpu_custom_call.1} parent=1 // pred_fallthru
      _
    // Predicated region
    $region26: #{tpu_custom_call.1} parent=1 // pred_check
      _
    $region27: #{tpu_custom_call.1} parent=1 // pred_check_branch
      %57 = sbr.rel (0) target = $region29
    $region28: #{tpu_custom_call.1} parent=1 // pred_region
      %58 = dma.done [#allocation6], 2048
    $region29: #{tpu_custom_call.1} parent=1 // pred_fallthru
      _
    // Predicated region
    $region30: #{tpu_custom_call.1} parent=1 // pred_check
      _
    $region31: #{tpu_custom_call.1} parent=1 // pred_check_branch
      %60 = sbr.rel (0) target = $region33
    $region32: #{tpu_custom_call.1} parent=1 // pred_region
      %61 = dma.done [#allocation6], 2048
    $region33: #{tpu_custom_call.1} parent=1 // pred_fallthru
      _
    %p62 = scmp.eq.s32.totalorder 0, 0
    // Predicated region
    $region34: #{tpu_custom_call.1} parent=1 // pred_check
      %p63 = pneg %p62
    $region35: #{tpu_custom_call.1} parent=1 // pred_check_branch
      %65 = sbr.rel (%p63) target = $region37
    $region36: #{tpu_custom_call.1} parent=1 // pred_region
      %v66 = vld [vmem:[%s4] sm:$0x1]
      %v68 = vlaneseq
      %v69 = vshrl.u32 %v68, 7
      %v70 = vsub.s32 0, %v69
      %v71 = vrot.slane %v66, %v70
      %73 = vst [vmem:[#allocation8] sm:$0xff] %v71
      %74 = vst [vmem:[#allocation8 + $0x8] sm:$0xff] %v71
    $region37: #{tpu_custom_call.1} parent=1 // pred_fallthru
      _
    %v75 = vld [vmem:[#allocation2] sm:$0xff]
    %v76 = vld [vmem:[#allocation2 + $0x8] sm:$0xff]
    %v77 = vld [vmem:[#allocation5] sm:$0xff]
    %v78 = vld [vmem:[#allocation5 + $0x8] sm:$0xff]
    %v79 = vld [vmem:[#allocation5 + $0x10] sm:$0xff]
    %v80 = vld [vmem:[#allocation5 + $0x18] sm:$0xff]
    %v81 = vld [vmem:[#allocation5 + $0x20] sm:$0xff]
    %v82 = vld [vmem:[#allocation5 + $0x28] sm:$0xff]
    %v83 = vld [vmem:[#allocation5 + $0x30] sm:$0xff]
    %v84 = vld [vmem:[#allocation5 + $0x38] sm:$0xff]
    %v85 = vld [vmem:[#allocation5 + $0x40] sm:$0xff]
    %v86 = vld [vmem:[#allocation5 + $0x48] sm:$0xff]
    %v87 = vld [vmem:[#allocation5 + $0x50] sm:$0xff]
    %v88 = vld [vmem:[#allocation5 + $0x58] sm:$0xff]
    %v89 = vld [vmem:[#allocation5 + $0x60] sm:$0xff]
    %v90 = vld [vmem:[#allocation5 + $0x68] sm:$0xff]
    %v91 = vld [vmem:[#allocation5 + $0x70] sm:$0xff]
    %v92 = vld [vmem:[#allocation5 + $0x78] sm:$0xff]
    %v93 = vld [vmem:[%s2] sm:$0x1]
    %v95 = vlaneseq
    %v96 = vshrl.u32 %v95, 7
    %v97 = vsub.s32 0, %v96
    %v98 = vrot.slane %v93, %v97
    %100 = vmatprep.subr.mxu0 0.0
    %101 = vmatpush1.msra.mxu0 %v92
    %102 = vmatprep.subr.mxu0 0.0
    %103 = vmatpush1.msra.mxu0 %v91
    %104 = vmatprep.subr.mxu0 0.0
    %105 = vmatpush1.msra.mxu0 %v90
    %106 = vmatprep.subr.mxu0 0.0
    %107 = vmatpush1.msra.mxu0 %v89
    %108 = vmatprep.subr.mxu0 0.0
    %109 = vmatpush1.msra.mxu0 %v88
    %110 = vmatprep.subr.mxu0 0.0
    %111 = vmatpush1.msra.mxu0 %v87
    %112 = vmatprep.subr.mxu0 0.0
    %113 = vmatpush1.msra.mxu0 %v86
    %114 = vmatprep.subr.mxu0 0.0
    %115 = vmatpush1.msra.mxu0 %v85
    %116 = vmatprep.subr.mxu0 0.0
    %117 = vmatpush1.msra.mxu0 %v84
    %118 = vmatprep.subr.mxu0 0.0
    %119 = vmatpush1.msra.mxu0 %v83
    %120 = vmatprep.subr.mxu0 0.0
    %121 = vmatpush1.msra.mxu0 %v82
    %122 = vmatprep.subr.mxu0 0.0
    %123 = vmatpush1.msra.mxu0 %v81
    %124 = vmatprep.subr.mxu0 0.0
    %125 = vmatpush1.msra.mxu0 %v80
    %126 = vmatprep.subr.mxu0 0.0
    %127 = vmatpush1.msra.mxu0 %v79
    %128 = vmatprep.subr.mxu0 0.0
    %129 = vmatpush1.msra.mxu0 %v78
    %130 = vmatprep.subr.mxu0 0.0
    %131 = vmatpush1.msra.mxu0 %v77
    %132 = vmatprep.subr.mxu0 0.0
    %133 = vmatpush2.msra.mxu0 0.0
    %134 = vmatprep.subr.mxu0 0.0
    %135 = vmatpush2.msra.mxu0 0.0
    %136 = vmatprep.subr.mxu0 0.0
    %137 = vmatpush2.msra.mxu0 0.0
    %138 = vmatprep.subr.mxu0 0.0
    %139 = vmatpush2.msra.mxu0 0.0
    %140 = vmatprep.subr.mxu0 0.0
    %141 = vmatpush2.msra.mxu0 0.0
    %142 = vmatprep.subr.mxu0 0.0
    %143 = vmatpush2.msra.mxu0 0.0
    %144 = vmatprep.subr.mxu0 0.0
    %145 = vmatpush2.msra.mxu0 0.0
    %146 = vmatprep.subr.mxu0 0.0
    %147 = vmatpush2.msra.mxu0 0.0
    %148 = vmatprep.subr.mxu0 0.0
    %149 = vmatpush2.msra.mxu0 0.0
    %150 = vmatprep.subr.mxu0 0.0
    %151 = vmatpush2.msra.mxu0 0.0
    %152 = vmatprep.subr.mxu0 0.0
    %153 = vmatpush2.msra.mxu0 0.0
    %154 = vmatprep.subr.mxu0 0.0
    %155 = vmatpush2.msra.mxu0 0.0
    %156 = vmatprep.subr.mxu0 0.0
    %157 = vmatpush2.msra.mxu0 0.0
    %158 = vmatprep.subr.mxu0 0.0
    %159 = vmatpush2.msra.mxu0 0.0
    %160 = vmatprep.subr.mxu0 0.0
    %161 = vmatpush2.msra.mxu0 0.0
    %162 = vmatprep.subr.mxu0 0.0
    %163 = vmatpush2.msra.mxu0 0.0
    %164 = vmatprep.mubr.f32.mxu0 0.0
    %165 = vmatmul.mubr.f32.gmra.mxu0 %v75
    %v166 = vpop.f32.mrf.mxu0
    %v167 = vadd.f32 %v98, %v166
    %v168 = vpop.f32.mrf.mxu0
    %169 = vmatprep.mubr.f32.mxu0 0.0
    %170 = vmatmul.mubr.f32.gmra.mxu0 %v76
    %v171 = vpop.f32.mrf.mxu0
    %v172 = vadd.f32 %v98, %v171
    %v173 = vpop.f32.mrf.mxu0
    %174 = vdwg.mxu0
    %v175 = vmul.f32 %v167, 0.5
    %v176 = vmul.f32 %v172, 0.5
    %v177 = vmul.f32 %v167, 0.70710677
    %v178 = vmul.f32 %v172, 0.70710677
    %v179 = verf.f32.pop %v177
    %v180 = verf.f32.pop %v178
    %v181 = vadd.f32 %v179, 1.0
    %v182 = vadd.f32 %v180, 1.0
    %v183 = vmul.f32 %v175, %v181
    %v184 = vmul.f32 %v176, %v182
    %v185 = vld [vmem:[#allocation8] sm:$0xff]
    %v186 = vld [vmem:[#allocation8 + $0x8] sm:$0xff]
    %v187 = vld [vmem:[#allocation7] sm:$0xff]
    %v188 = vld [vmem:[#allocation7 + $0x8] sm:$0xff]
    %v189 = vld [vmem:[#allocation7 + $0x10] sm:$0xff]
    %v190 = vld [vmem:[#allocation7 + $0x18] sm:$0xff]
    %v191 = vld [vmem:[#allocation7 + $0x20] sm:$0xff]
    %v192 = vld [vmem:[#allocation7 + $0x28] sm:$0xff]
    %v193 = vld [vmem:[#allocation7 + $0x30] sm:$0xff]
    %v194 = vld [vmem:[#allocation7 + $0x38] sm:$0xff]
    %v195 = vld [vmem:[#allocation7 + $0x40] sm:$0xff]
    %v196 = vld [vmem:[#allocation7 + $0x48] sm:$0xff]
    %v197 = vld [vmem:[#allocation7 + $0x50] sm:$0xff]
    %v198 = vld [vmem:[#allocation7 + $0x58] sm:$0xff]
    %v199 = vld [vmem:[#allocation7 + $0x60] sm:$0xff]
    %v200 = vld [vmem:[#allocation7 + $0x68] sm:$0xff]
    %v201 = vld [vmem:[#allocation7 + $0x70] sm:$0xff]
    %v202 = vld [vmem:[#allocation7 + $0x78] sm:$0xff]
    %203 = vmatprep.subr.mxu0 0.0
    %204 = vmatpush1.msra.mxu0 %v202
    %205 = vmatprep.subr.mxu0 0.0
    %206 = vmatpush1.msra.mxu0 %v201
    %207 = vmatprep.subr.mxu0 0.0
    %208 = vmatpush1.msra.mxu0 %v200
    %209 = vmatprep.subr.mxu0 0.0
    %210 = vmatpush1.msra.mxu0 %v199
    %211 = vmatprep.subr.mxu0 0.0
    %212 = vmatpush1.msra.mxu0 %v198
    %213 = vmatprep.subr.mxu0 0.0
    %214 = vmatpush1.msra.mxu0 %v197
    %215 = vmatprep.subr.mxu0 0.0
    %216 = vmatpush1.msra.mxu0 %v196
    %217 = vmatprep.subr.mxu0 0.0
    %218 = vmatpush1.msra.mxu0 %v195
    %219 = vmatprep.subr.mxu0 0.0
    %220 = vmatpush1.msra.mxu0 %v194
    %221 = vmatprep.subr.mxu0 0.0
    %222 = vmatpush1.msra.mxu0 %v193
    %223 = vmatprep.subr.mxu0 0.0
    %224 = vmatpush1.msra.mxu0 %v192
    %225 = vmatprep.subr.mxu0 0.0
    %226 = vmatpush1.msra.mxu0 %v191
    %227 = vmatprep.subr.mxu0 0.0
    %228 = vmatpush1.msra.mxu0 %v190
    %229 = vmatprep.subr.mxu0 0.0
    %230 = vmatpush1.msra.mxu0 %v189
    %231 = vmatprep.subr.mxu0 0.0
    %232 = vmatpush1.msra.mxu0 %v188
    %233 = vmatprep.subr.mxu0 0.0
    %234 = vmatpush1.msra.mxu0 %v187
    %235 = vmatprep.subr.mxu0 0.0
    %236 = vmatpush2.msra.mxu0 0.0
    %237 = vmatprep.subr.mxu0 0.0
    %238 = vmatpush2.msra.mxu0 0.0
    %239 = vmatprep.subr.mxu0 0.0
    %240 = vmatpush2.msra.mxu0 0.0
    %241 = vmatprep.subr.mxu0 0.0
    %242 = vmatpush2.msra.mxu0 0.0
    %243 = vmatprep.subr.mxu0 0.0
    %244 = vmatpush2.msra.mxu0 0.0
    %245 = vmatprep.subr.mxu0 0.0
    %246 = vmatpush2.msra.mxu0 0.0
    %247 = vmatprep.subr.mxu0 0.0
    %248 = vmatpush2.msra.mxu0 0.0
    %249 = vmatprep.subr.mxu0 0.0
    %250 = vmatpush2.msra.mxu0 0.0
    %251 = vmatprep.subr.mxu0 0.0
    %252 = vmatpush2.msra.mxu0 0.0
    %253 = vmatprep.subr.mxu0 0.0
    %254 = vmatpush2.msra.mxu0 0.0
    %255 = vmatprep.subr.mxu0 0.0
    %256 = vmatpush2.msra.mxu0 0.0
    %257 = vmatprep.subr.mxu0 0.0
    %258 = vmatpush2.msra.mxu0 0.0
    %259 = vmatprep.subr.mxu0 0.0
    %260 = vmatpush2.msra.mxu0 0.0
    %261 = vmatprep.subr.mxu0 0.0
    %262 = vmatpush2.msra.mxu0 0.0
    %263 = vmatprep.subr.mxu0 0.0
    %264 = vmatpush2.msra.mxu0 0.0
    %265 = vmatprep.subr.mxu0 0.0
    %266 = vmatpush2.msra.mxu0 0.0
    %267 = vmatprep.mubr.f32.mxu0 0.0
    %268 = vmatmul.mubr.f32.gmra.mxu0 %v183
    %v269 = vpop.f32.mrf.mxu0
    %v270 = vadd.f32 0.0, %v269
    %v271 = vpop.f32.mrf.mxu0
    %272 = vmatprep.mubr.f32.mxu0 0.0
    %273 = vmatmul.mubr.f32.gmra.mxu0 %v184
    %v274 = vpop.f32.mrf.mxu0
    %v275 = vadd.f32 0.0, %v274
    %v276 = vpop.f32.mrf.mxu0
    %277 = vdwg.mxu0
    %v278 = vadd.f32 %v185, %v270
    %v279 = vadd.f32 %v186, %v275
    %280 = vst [vmem:[#allocation8] sm:$0xff] %v278
    %281 = vst [vmem:[#allocation8 + $0x8] sm:$0xff] %v279
    // Predicated region
    $region38: #{tpu_custom_call.1} parent=1 // pred_check
      _
    $region39: #{tpu_custom_call.1} parent=1 // pred_check_branch
      %283 = sbr.rel (0) target = $region41
    $region40: #{tpu_custom_call.1} parent=1 // pred_region
      %s285 = ssub.s32 256, 256
      %286 = vsyncadd [#allocation4], %s285
      %s287 = sshll.u32 [#allocation8], 4
      %s288 = int_to_ptr.vmem [resolvable:$true] %s287
      %293 = dma.vmem_to_hbm [thread:$0]  %s288, 256, %s5, [#allocation4], 128, 128, 8
    $region41: #{tpu_custom_call.1} parent=1 // pred_fallthru
      _
    // Predicated region
    $region42: #{tpu_custom_call.1} parent=1 // pred_check
      _
    $region43: #{tpu_custom_call.1} parent=1 // pred_check_branch
      %295 = sbr.rel (0) target = $region45
    $region44: #{tpu_custom_call.1} parent=1 // pred_region
      %296 = dma.done [#allocation4], 256
    $region45: #{tpu_custom_call.1} parent=1 // pred_fallthru
      _
    %297 = vsyncpa [#allocation3], 1
    %298 = vsyncpa [#allocation6], 1
    %299 = vsyncpa [#allocation4], 1

</llo_original>
